<compile_context>
chip_gen: v6e
topology: v6e:2x2x1
jax: 0.10.0
libtpu: 0.0.40
codegen_flags: <defaults>
</compile_context>

<pallas_src>
import math

import jax
import jax.numpy as jnp
from jax import lax
from jax.experimental import pallas as pl
from jax.experimental.pallas import tpu as pltpu


def lstm1_kernel(dprev_ref, x_ref, wih_ref, whh_ref, b_ref, dw_ref, db_ref,
                 h0_ref, c0_ref, out_ref, hs_ref):
    """Full LSTM1 forward for one (batch=1) sequence.

    dprev_ref : VMEM (seq, 1)   dt used at step i (dt[i-1]); row 0 unused
    x_ref     : VMEM (seq, D)   inputs
    wih_ref   : VMEM (D, 4H)    W_ih^T  (g-gate cols pre-scaled x2)
    whh_ref   : VMEM (H, 4H)    W_hh^T  (g-gate cols pre-scaled x2)
    b_ref     : VMEM (1, 4H)    b_ih + b_hh (g-gate cols pre-scaled x2)
    dw_ref    : VMEM (1, H)     decay Linear weight^T (in_features=1)
    db_ref    : VMEM (1, H)     decay Linear bias
    h0_ref    : VMEM (1, H)     initial hidden
    c0_ref    : VMEM (1, H)     initial cell
    out_ref   : VMEM (1, H)     attention context output
    hs_ref    : VMEM scratch (seq, H) stacked hidden states
    """
    seq = x_ref.shape[0]
    H = h0_ref.shape[1]

    whh = whh_ref[...]

    # --- hoisted input projection: one (seq, 4H) MXU matmul + bias, off the
    #     serial chain.
    gates_x = (jnp.dot(x_ref[...], wih_ref[...],
                       preferred_element_type=jnp.float32)
               + b_ref[...])                                   # (seq, 4H)

    # --- precomputed decay table: gamma[i] = exp(-relu(dt[i-1]*dw + db)).
    #     Single vectorized EUP/VPU pass; row 0 is never used (no decay at i=0).
    gamma = jnp.exp(-jnp.maximum(dprev_ref[...] * dw_ref[...] + db_ref[...],
                                 0.0))                         # (seq, H)

    h = h0_ref[...]
    c = c0_ref[...]

    # --- statically unrolled recurrence (seq is small & static): only the true
    #     recurrent matmul + gate math sits on the serial dependency chain.
    for i in range(seq):
        if i > 0:
            h = h * gamma[i:i + 1, :]                          # time decay

        # gates = gates_x[i] + h @ W_hh^T        (1, 4H) == one f32 vreg
        gates = gates_x[i:i + 1, :] + jnp.dot(
            h, whh, preferred_element_type=jnp.float32)

        # One full-vreg sigmoid activates all four gates; the g-gate block was
        # pre-scaled by 2 so tanh(z) = 2*sigmoid(2z) - 1 is recovered on the VPU.
        s = jax.nn.sigmoid(gates)
        i_g = s[:, 0 * H:1 * H]
        f_g = s[:, 1 * H:2 * H]
        g_g = 2.0 * s[:, 2 * H:3 * H] - 1.0                    # == tanh(z_g)
        o_g = s[:, 3 * H:4 * H]

        c = f_g * c + i_g * g_g
        h = o_g * jnp.tanh(c)

        hs_ref[pl.ds(i, 1), :] = h

    # --- attention_net: scores = hs . h_final ; softmax over seq ;
    #     context = sum_s p_s * hs_s
    hs = hs_ref[...]                                           # (seq, H)
    scores = jnp.sum(hs * h, axis=1, keepdims=True)            # (seq, 1)
    m = jnp.max(scores, axis=0, keepdims=True)
    e = jnp.exp(scores - m)
    p = e / jnp.sum(e, axis=0, keepdims=True)                  # softmax over seq
    out_ref[...] = jnp.sum(p * hs, axis=0, keepdims=True)      # (1, H)


def lstm1_forward(x, time, params):
    """x: (1, seq, D) float32, time: (seq,) float32 -> (1, H) float32."""
    wih_t, whh_t, b, dw, db, h0, c0 = params
    seq, D = x.shape[1], x.shape[2]
    H = h0.shape[1]

    # dt[i] = time[i] - time[i-1], dt[0] = 0; step i>0 uses dt[i-1].
    dt = jnp.concatenate([jnp.zeros((1,), jnp.float32), time[1:] - time[:-1]])
    d_prev = jnp.concatenate([jnp.zeros((1,), jnp.float32),
                              dt[:-1]]).reshape(seq, 1)

    # Pre-scale the g-gate (cell candidate) column block by 2 so a single
    # full-vreg sigmoid activates all gates: tanh(z) = 2*sigmoid(2z) - 1.
    def scale_g(w):
        return w.at[:, 2 * H:3 * H].multiply(2.0)

    wih_s, whh_s, b_s = scale_g(wih_t), scale_g(whh_t), scale_g(b)

    xs = x[0]  # (seq, D) -- batch == 1

    vmem = pl.BlockSpec(memory_space=pltpu.MemorySpace.VMEM)

    return pl.pallas_call(
        lstm1_kernel,
        out_shape=jax.ShapeDtypeStruct((1, H), jnp.float32),
        in_specs=[vmem] * 9,
        out_specs=vmem,
        scratch_shapes=[pltpu.VMEM((seq, H), jnp.float32)],
    )(d_prev, xs, wih_s, whh_s, b_s, dw, db, h0, c0)


# ---------------- pure-JAX reference (for correctness check) ----------------
def lstm1_reference(x, time, params):
    wih_t, whh_t, b, dw, db, h0, c0 = params
    seq = x.shape[1]
    H = h0.shape[1]
    dt = jnp.concatenate([jnp.zeros((1,), jnp.float32), time[1:] - time[:-1]])
    h, c = h0, c0
    hs = []
    for i in range(seq):
        if i > 0:
            gamma = jnp.exp(-jnp.maximum(dt[i - 1] * dw + db, 0.0))
            h = h * gamma
        gates = x[:, i, :] @ wih_t + h @ whh_t + b
        i_g = jax.nn.sigmoid(gates[:, 0 * H:1 * H])
        f_g = jax.nn.sigmoid(gates[:, 1 * H:2 * H])
        g_g = jnp.tanh(gates[:, 2 * H:3 * H])
        o_g = jax.nn.sigmoid(gates[:, 3 * H:4 * H])
        c = f_g * c + i_g * g_g
        h = o_g * jnp.tanh(c)
        hs.append(h)
    hs = jnp.stack(hs, axis=1)                                # (1, seq, H)
    scores = jnp.einsum("bsh,bh->bs", hs, h)
    p = jax.nn.softmax(scores, axis=1)
    return jnp.einsum("bsh,bs->bh", hs, p)


def init_params(key, input_size, hidden_size):
    """Deterministic synthetic init mirroring the module's init_weights()."""
    D, H = input_size, hidden_size
    ks = jax.random.split(key, 8)

    def xavier(k, shape):
        fan_out, fan_in = shape
        limit = math.sqrt(6.0 / (fan_in + fan_out))
        return jax.random.uniform(k, shape, jnp.float32, -limit, limit)

    w_ih = xavier(ks[0], (4 * H, D))                 # LSTMCell weight_ih
    w_hh = xavier(ks[1], (4 * H, H))                 # LSTMCell weight_hh
    b_ih = jax.random.uniform(ks[2], (4 * H,), jnp.float32, 0.0, 1.0)
    b_hh = jax.random.uniform(ks[3], (4 * H,), jnp.float32, 0.0, 1.0)
    dec_w = xavier(ks[4], (H, 1))                    # decay Linear weight
    dec_b = jax.random.uniform(ks[5], (H,), jnp.float32, 0.0, 1.0)
    # h0/c0 ~ N(0, 0.1): the PyTorch module draws these with np.random per
    # forward call; here they are drawn once, deterministically, as params.
    # TODO(synk): per-call np.random h0/c0 has no in-kernel equivalent.
    h0 = 0.1 * jax.random.normal(ks[6], (1, H), jnp.float32)
    c0 = 0.1 * jax.random.normal(ks[7], (1, H), jnp.float32)

    params = (
        w_ih.T,                                      # (D, 4H)
        w_hh.T,                                      # (H, 4H)
        (b_ih + b_hh).reshape(1, 4 * H),             # (1, 4H)
        dec_w.T,                                     # (1, H)
        dec_b.reshape(1, H),                         # (1, H)
        h0, c0,
    )
    return params


if __name__ == "__main__":
    input_size, hidden_size, seq = 16, 32, 8

    key = jax.random.PRNGKey(0)
    k_x, k_t, k_p = jax.random.split(key, 3)

    x = jax.random.normal(k_x, (1, seq, input_size), jnp.float32)
    time = jnp.cumsum(jax.random.uniform(k_t, (seq,), jnp.float32, 0.1, 1.0))
    params = init_params(k_p, input_size, hidden_size)

    out = jax.jit(lstm1_forward)(x, time, params)
    out = jax.block_until_ready(out)

    ref = lstm1_reference(x, time, params)
    assert out.shape == (1, hidden_size)
    assert jnp.allclose(out, ref, atol=1e-3, rtol=1e-3), "mismatch vs JAX reference"

    print("KERNEL_OK")
</pallas_src>

<mosaic_0001>
module attributes {stable_mosaic.version = 11 : i64} {
  func.func @lstm1_kernel(%arg0: memref<8x1xf32, #tpu.memory_space<vmem>>, %arg1: memref<8x16xf32, #tpu.memory_space<vmem>>, %arg2: memref<16x128xf32, #tpu.memory_space<vmem>>, %arg3: memref<32x128xf32, #tpu.memory_space<vmem>>, %arg4: memref<1x128xf32, #tpu.memory_space<vmem>>, %arg5: memref<1x32xf32, #tpu.memory_space<vmem>>, %arg6: memref<1x32xf32, #tpu.memory_space<vmem>>, %arg7: memref<1x32xf32, #tpu.memory_space<vmem>>, %arg8: memref<1x32xf32, #tpu.memory_space<vmem>>, %arg9: memref<1x32xf32, #tpu.memory_space<vmem>>, %arg10: memref<8x32xf32, #tpu.memory_space<vmem>>) attributes {dimension_semantics = [], scalar_prefetch = 0 : i64, scratch_operands = 1 : i64, tpu.core_type = #tpu.core_type<tc>} {
    %c0 = arith.constant 0 : index
    %c0_0 = arith.constant 0 : index
    %0 = vector.load %arg3[%c0, %c0_0] : memref<32x128xf32, #tpu.memory_space<vmem>>, vector<32x128xf32>
    %c0_1 = arith.constant 0 : index
    %c0_2 = arith.constant 0 : index
    %1 = vector.load %arg1[%c0_1, %c0_2] : memref<8x16xf32, #tpu.memory_space<vmem>>, vector<8x16xf32>
    %c0_3 = arith.constant 0 : index
    %c0_4 = arith.constant 0 : index
    %2 = vector.load %arg2[%c0_3, %c0_4] : memref<16x128xf32, #tpu.memory_space<vmem>>, vector<16x128xf32>
    %cst = arith.constant dense<0.000000e+00> : vector<8x128xf32>
    %3 = tpu.matmul %1, %2, %cst {dimension_numbers = #tpu.dot_dimension_numbers<[1], [0], [0], [1], [0, 0, 1, 1], [], []>} : vector<8x16xf32>, vector<16x128xf32>, vector<8x128xf32> -> vector<8x128xf32>
    %c0_5 = arith.constant 0 : index
    %c0_6 = arith.constant 0 : index
    %4 = vector.load %arg4[%c0_5, %c0_6] : memref<1x128xf32, #tpu.memory_space<vmem>>, vector<1x128xf32>
    %5 = vector.broadcast %4 : vector<1x128xf32> to vector<8x128xf32>
    %6 = arith.addf %3, %5 : vector<8x128xf32>
    %c0_7 = arith.constant 0 : index
    %c0_8 = arith.constant 0 : index
    %7 = vector.load %arg0[%c0_7, %c0_8] : memref<8x1xf32, #tpu.memory_space<vmem>>, vector<8x1xf32>
    %c0_9 = arith.constant 0 : index
    %c0_10 = arith.constant 0 : index
    %8 = vector.load %arg5[%c0_9, %c0_10] : memref<1x32xf32, #tpu.memory_space<vmem>>, vector<1x32xf32>
    %9 = vector.broadcast %7 : vector<8x1xf32> to vector<8x32xf32>
    %10 = vector.broadcast %8 : vector<1x32xf32> to vector<8x32xf32>
    %11 = arith.mulf %9, %10 : vector<8x32xf32>
    %c0_11 = arith.constant 0 : index
    %c0_12 = arith.constant 0 : index
    %12 = vector.load %arg6[%c0_11, %c0_12] : memref<1x32xf32, #tpu.memory_space<vmem>>, vector<1x32xf32>
    %13 = vector.broadcast %12 : vector<1x32xf32> to vector<8x32xf32>
    %14 = arith.addf %11, %13 : vector<8x32xf32>
    %cst_13 = arith.constant 0.000000e+00 : f32
    %15 = vector.broadcast %cst_13 : f32 to vector<8x32xf32>
    %16 = arith.maximumf %14, %15 : vector<8x32xf32>
    %cst_14 = arith.constant 0.000000e+00 : f32
    %17 = vector.broadcast %cst_14 : f32 to vector<8x32xf32>
    %18 = arith.subf %17, %16 : vector<8x32xf32>
    %19 = math.exp %18 : vector<8x32xf32>
    %c0_15 = arith.constant 0 : index
    %c0_16 = arith.constant 0 : index
    %20 = vector.load %arg7[%c0_15, %c0_16] : memref<1x32xf32, #tpu.memory_space<vmem>>, vector<1x32xf32>
    %c0_17 = arith.constant 0 : index
    %c0_18 = arith.constant 0 : index
    %21 = vector.load %arg8[%c0_17, %c0_18] : memref<1x32xf32, #tpu.memory_space<vmem>>, vector<1x32xf32>
    %22 = vector.extract_strided_slice %6 {offsets = [0, 0], sizes = [1, 128], strides = [1, 1]} : vector<8x128xf32> to vector<1x128xf32>
    %cst_19 = arith.constant dense<0.000000e+00> : vector<1x128xf32>
    %23 = tpu.matmul %20, %0, %cst_19 {dimension_numbers = #tpu.dot_dimension_numbers<[1], [0], [0], [1], [0, 0, 1, 1], [], []>} : vector<1x32xf32>, vector<32x128xf32>, vector<1x128xf32> -> vector<1x128xf32>
    %24 = arith.addf %22, %23 : vector<1x128xf32>
    %25 = arith.negf %24 : vector<1x128xf32>
    %26 = math.exp %25 : vector<1x128xf32>
    %cst_20 = arith.constant 1.000000e+00 : f32
    %27 = vector.broadcast %cst_20 : f32 to vector<1x128xf32>
    %28 = arith.addf %27, %26 : vector<1x128xf32>
    %29 = arith.divf %27, %28 : vector<1x128xf32>
    %30 = vector.extract_strided_slice %29 {offsets = [0, 0], sizes = [1, 32], strides = [1, 1]} : vector<1x128xf32> to vector<1x32xf32>
    %31 = vector.extract_strided_slice %29 {offsets = [0, 32], sizes = [1, 32], strides = [1, 1]} : vector<1x128xf32> to vector<1x32xf32>
    %32 = vector.extract_strided_slice %29 {offsets = [0, 64], sizes = [1, 32], strides = [1, 1]} : vector<1x128xf32> to vector<1x32xf32>
    %cst_21 = arith.constant 2.000000e+00 : f32
    %33 = vector.broadcast %cst_21 : f32 to vector<1x32xf32>
    %34 = arith.mulf %33, %32 : vector<1x32xf32>
    %cst_22 = arith.constant 1.000000e+00 : f32
    %35 = vector.broadcast %cst_22 : f32 to vector<1x32xf32>
    %36 = arith.subf %34, %35 : vector<1x32xf32>
    %37 = vector.extract_strided_slice %29 {offsets = [0, 96], sizes = [1, 32], strides = [1, 1]} : vector<1x128xf32> to vector<1x32xf32>
    %38 = arith.mulf %31, %21 : vector<1x32xf32>
    %39 = arith.mulf %30, %36 : vector<1x32xf32>
    %40 = arith.addf %38, %39 : vector<1x32xf32>
    %41 = math.tanh %40 : vector<1x32xf32>
    %42 = arith.mulf %37, %41 : vector<1x32xf32>
    %c0_23 = arith.constant 0 : index
    %c0_24 = arith.constant 0 : index
    %43 = vector.load %arg10[%c0_23, %c0_24] : memref<8x32xf32, #tpu.memory_space<vmem>>, vector<1x32xf32>
    tpu.vector_store %arg10[%c0_23, %c0_24], %42 {strides = array<i32>} : memref<8x32xf32, #tpu.memory_space<vmem>>, vector<1x32xf32>,
    %44 = vector.extract_strided_slice %19 {offsets = [1, 0], sizes = [1, 32], strides = [1, 1]} : vector<8x32xf32> to vector<1x32xf32>
    %45 = arith.mulf %42, %44 : vector<1x32xf32>
    %46 = vector.extract_strided_slice %6 {offsets = [1, 0], sizes = [1, 128], strides = [1, 1]} : vector<8x128xf32> to vector<1x128xf32>
    %cst_25 = arith.constant dense<0.000000e+00> : vector<1x128xf32>
    %47 = tpu.matmul %45, %0, %cst_25 {dimension_numbers = #tpu.dot_dimension_numbers<[1], [0], [0], [1], [0, 0, 1, 1], [], []>} : vector<1x32xf32>, vector<32x128xf32>, vector<1x128xf32> -> vector<1x128xf32>
    %48 = arith.addf %46, %47 : vector<1x128xf32>
    %49 = arith.negf %48 : vector<1x128xf32>
    %50 = math.exp %49 : vector<1x128xf32>
    %cst_26 = arith.constant 1.000000e+00 : f32
    %51 = vector.broadcast %cst_26 : f32 to vector<1x128xf32>
    %52 = arith.addf %51, %50 : vector<1x128xf32>
    %53 = arith.divf %51, %52 : vector<1x128xf32>
    %54 = vector.extract_strided_slice %53 {offsets = [0, 0], sizes = [1, 32], strides = [1, 1]} : vector<1x128xf32> to vector<1x32xf32>
    %55 = vector.extract_strided_slice %53 {offsets = [0, 32], sizes = [1, 32], strides = [1, 1]} : vector<1x128xf32> to vector<1x32xf32>
    %56 = vector.extract_strided_slice %53 {offsets = [0, 64], sizes = [1, 32], strides = [1, 1]} : vector<1x128xf32> to vector<1x32xf32>
    %cst_27 = arith.constant 2.000000e+00 : f32
    %57 = vector.broadcast %cst_27 : f32 to vector<1x32xf32>
    %58 = arith.mulf %57, %56 : vector<1x32xf32>
    %cst_28 = arith.constant 1.000000e+00 : f32
    %59 = vector.broadcast %cst_28 : f32 to vector<1x32xf32>
    %60 = arith.subf %58, %59 : vector<1x32xf32>
    %61 = vector.extract_strided_slice %53 {offsets = [0, 96], sizes = [1, 32], strides = [1, 1]} : vector<1x128xf32> to vector<1x32xf32>
    %62 = arith.mulf %55, %40 : vector<1x32xf32>
    %63 = arith.mulf %54, %60 : vector<1x32xf32>
    %64 = arith.addf %62, %63 : vector<1x32xf32>
    %65 = math.tanh %64 : vector<1x32xf32>
    %66 = arith.mulf %61, %65 : vector<1x32xf32>
    %c1 = arith.constant 1 : index
    %c0_29 = arith.constant 0 : index
    %67 = vector.load %arg10[%c1, %c0_29] : memref<8x32xf32, #tpu.memory_space<vmem>>, vector<1x32xf32>
    tpu.vector_store %arg10[%c1, %c0_29], %66 {strides = array<i32>} : memref<8x32xf32, #tpu.memory_space<vmem>>, vector<1x32xf32>,
    %68 = vector.extract_strided_slice %19 {offsets = [2, 0], sizes = [1, 32], strides = [1, 1]} : vector<8x32xf32> to vector<1x32xf32>
    %69 = arith.mulf %66, %68 : vector<1x32xf32>
    %70 = vector.extract_strided_slice %6 {offsets = [2, 0], sizes = [1, 128], strides = [1, 1]} : vector<8x128xf32> to vector<1x128xf32>
    %cst_30 = arith.constant dense<0.000000e+00> : vector<1x128xf32>
    %71 = tpu.matmul %69, %0, %cst_30 {dimension_numbers = #tpu.dot_dimension_numbers<[1], [0], [0], [1], [0, 0, 1, 1], [], []>} : vector<1x32xf32>, vector<32x128xf32>, vector<1x128xf32> -> vector<1x128xf32>
    %72 = arith.addf %70, %71 : vector<1x128xf32>
    %73 = arith.negf %72 : vector<1x128xf32>
    %74 = math.exp %73 : vector<1x128xf32>
    %cst_31 = arith.constant 1.000000e+00 : f32
    %75 = vector.broadcast %cst_31 : f32 to vector<1x128xf32>
    %76 = arith.addf %75, %74 : vector<1x128xf32>
    %77 = arith.divf %75, %76 : vector<1x128xf32>
    %78 = vector.extract_strided_slice %77 {offsets = [0, 0], sizes = [1, 32], strides = [1, 1]} : vector<1x128xf32> to vector<1x32xf32>
    %79 = vector.extract_strided_slice %77 {offsets = [0, 32], sizes = [1, 32], strides = [1, 1]} : vector<1x128xf32> to vector<1x32xf32>
    %80 = vector.extract_strided_slice %77 {offsets = [0, 64], sizes = [1, 32], strides = [1, 1]} : vector<1x128xf32> to vector<1x32xf32>
    %cst_32 = arith.constant 2.000000e+00 : f32
    %81 = vector.broadcast %cst_32 : f32 to vector<1x32xf32>
    %82 = arith.mulf %81, %80 : vector<1x32xf32>
    %cst_33 = arith.constant 1.000000e+00 : f32
    %83 = vector.broadcast %cst_33 : f32 to vector<1x32xf32>
    %84 = arith.subf %82, %83 : vector<1x32xf32>
    %85 = vector.extract_strided_slice %77 {offsets = [0, 96], sizes = [1, 32], strides = [1, 1]} : vector<1x128xf32> to vector<1x32xf32>
    %86 = arith.mulf %79, %64 : vector<1x32xf32>
    %87 = arith.mulf %78, %84 : vector<1x32xf32>
    %88 = arith.addf %86, %87 : vector<1x32xf32>
    %89 = math.tanh %88 : vector<1x32xf32>
    %90 = arith.mulf %85, %89 : vector<1x32xf32>
    %c2 = arith.constant 2 : index
    %c0_34 = arith.constant 0 : index
    %91 = vector.load %arg10[%c2, %c0_34] : memref<8x32xf32, #tpu.memory_space<vmem>>, vector<1x32xf32>
    tpu.vector_store %arg10[%c2, %c0_34], %90 {strides = array<i32>} : memref<8x32xf32, #tpu.memory_space<vmem>>, vector<1x32xf32>,
    %92 = vector.extract_strided_slice %19 {offsets = [3, 0], sizes = [1, 32], strides = [1, 1]} : vector<8x32xf32> to vector<1x32xf32>
    %93 = arith.mulf %90, %92 : vector<1x32xf32>
    %94 = vector.extract_strided_slice %6 {offsets = [3, 0], sizes = [1, 128], strides = [1, 1]} : vector<8x128xf32> to vector<1x128xf32>
    %cst_35 = arith.constant dense<0.000000e+00> : vector<1x128xf32>
    %95 = tpu.matmul %93, %0, %cst_35 {dimension_numbers = #tpu.dot_dimension_numbers<[1], [0], [0], [1], [0, 0, 1, 1], [], []>} : vector<1x32xf32>, vector<32x128xf32>, vector<1x128xf32> -> vector<1x128xf32>
    %96 = arith.addf %94, %95 : vector<1x128xf32>
    %97 = arith.negf %96 : vector<1x128xf32>
    %98 = math.exp %97 : vector<1x128xf32>
    %cst_36 = arith.constant 1.000000e+00 : f32
    %99 = vector.broadcast %cst_36 : f32 to vector<1x128xf32>
    %100 = arith.addf %99, %98 : vector<1x128xf32>
    %101 = arith.divf %99, %100 : vector<1x128xf32>
    %102 = vector.extract_strided_slice %101 {offsets = [0, 0], sizes = [1, 32], strides = [1, 1]} : vector<1x128xf32> to vector<1x32xf32>
    %103 = vector.extract_strided_slice %101 {offsets = [0, 32], sizes = [1, 32], strides = [1, 1]} : vector<1x128xf32> to vector<1x32xf32>
    %104 = vector.extract_strided_slice %101 {offsets = [0, 64], sizes = [1, 32], strides = [1, 1]} : vector<1x128xf32> to vector<1x32xf32>
    %cst_37 = arith.constant 2.000000e+00 : f32
    %105 = vector.broadcast %cst_37 : f32 to vector<1x32xf32>
    %106 = arith.mulf %105, %104 : vector<1x32xf32>
    %cst_38 = arith.constant 1.000000e+00 : f32
    %107 = vector.broadcast %cst_38 : f32 to vector<1x32xf32>
    %108 = arith.subf %106, %107 : vector<1x32xf32>
    %109 = vector.extract_strided_slice %101 {offsets = [0, 96], sizes = [1, 32], strides = [1, 1]} : vector<1x128xf32> to vector<1x32xf32>
    %110 = arith.mulf %103, %88 : vector<1x32xf32>
    %111 = arith.mulf %102, %108 : vector<1x32xf32>
    %112 = arith.addf %110, %111 : vector<1x32xf32>
    %113 = math.tanh %112 : vector<1x32xf32>
    %114 = arith.mulf %109, %113 : vector<1x32xf32>
    %c3 = arith.constant 3 : index
    %c0_39 = arith.constant 0 : index
    %115 = vector.load %arg10[%c3, %c0_39] : memref<8x32xf32, #tpu.memory_space<vmem>>, vector<1x32xf32>
    tpu.vector_store %arg10[%c3, %c0_39], %114 {strides = array<i32>} : memref<8x32xf32, #tpu.memory_space<vmem>>, vector<1x32xf32>,
    %116 = vector.extract_strided_slice %19 {offsets = [4, 0], sizes = [1, 32], strides = [1, 1]} : vector<8x32xf32> to vector<1x32xf32>
    %117 = arith.mulf %114, %116 : vector<1x32xf32>
    %118 = vector.extract_strided_slice %6 {offsets = [4, 0], sizes = [1, 128], strides = [1, 1]} : vector<8x128xf32> to vector<1x128xf32>
    %cst_40 = arith.constant dense<0.000000e+00> : vector<1x128xf32>
    %119 = tpu.matmul %117, %0, %cst_40 {dimension_numbers = #tpu.dot_dimension_numbers<[1], [0], [0], [1], [0, 0, 1, 1], [], []>} : vector<1x32xf32>, vector<32x128xf32>, vector<1x128xf32> -> vector<1x128xf32>
    %120 = arith.addf %118, %119 : vector<1x128xf32>
    %121 = arith.negf %120 : vector<1x128xf32>
    %122 = math.exp %121 : vector<1x128xf32>
    %cst_41 = arith.constant 1.000000e+00 : f32
    %123 = vector.broadcast %cst_41 : f32 to vector<1x128xf32>
    %124 = arith.addf %123, %122 : vector<1x128xf32>
    %125 = arith.divf %123, %124 : vector<1x128xf32>
    %126 = vector.extract_strided_slice %125 {offsets = [0, 0], sizes = [1, 32], strides = [1, 1]} : vector<1x128xf32> to vector<1x32xf32>
    %127 = vector.extract_strided_slice %125 {offsets = [0, 32], sizes = [1, 32], strides = [1, 1]} : vector<1x128xf32> to vector<1x32xf32>
    %128 = vector.extract_strided_slice %125 {offsets = [0, 64], sizes = [1, 32], strides = [1, 1]} : vector<1x128xf32> to vector<1x32xf32>
    %cst_42 = arith.constant 2.000000e+00 : f32
    %129 = vector.broadcast %cst_42 : f32 to vector<1x32xf32>
    %130 = arith.mulf %129, %128 : vector<1x32xf32>
    %cst_43 = arith.constant 1.000000e+00 : f32
    %131 = vector.broadcast %cst_43 : f32 to vector<1x32xf32>
    %132 = arith.subf %130, %131 : vector<1x32xf32>
    %133 = vector.extract_strided_slice %125 {offsets = [0, 96], sizes = [1, 32], strides = [1, 1]} : vector<1x128xf32> to vector<1x32xf32>
    %134 = arith.mulf %127, %112 : vector<1x32xf32>
    %135 = arith.mulf %126, %132 : vector<1x32xf32>
    %136 = arith.addf %134, %135 : vector<1x32xf32>
    %137 = math.tanh %136 : vector<1x32xf32>
    %138 = arith.mulf %133, %137 : vector<1x32xf32>
    %c4 = arith.constant 4 : index
    %c0_44 = arith.constant 0 : index
    %139 = vector.load %arg10[%c4, %c0_44] : memref<8x32xf32, #tpu.memory_space<vmem>>, vector<1x32xf32>
    tpu.vector_store %arg10[%c4, %c0_44], %138 {strides = array<i32>} : memref<8x32xf32, #tpu.memory_space<vmem>>, vector<1x32xf32>,
    %140 = vector.extract_strided_slice %19 {offsets = [5, 0], sizes = [1, 32], strides = [1, 1]} : vector<8x32xf32> to vector<1x32xf32>
    %141 = arith.mulf %138, %140 : vector<1x32xf32>
    %142 = vector.extract_strided_slice %6 {offsets = [5, 0], sizes = [1, 128], strides = [1, 1]} : vector<8x128xf32> to vector<1x128xf32>
    %cst_45 = arith.constant dense<0.000000e+00> : vector<1x128xf32>
    %143 = tpu.matmul %141, %0, %cst_45 {dimension_numbers = #tpu.dot_dimension_numbers<[1], [0], [0], [1], [0, 0, 1, 1], [], []>} : vector<1x32xf32>, vector<32x128xf32>, vector<1x128xf32> -> vector<1x128xf32>
    %144 = arith.addf %142, %143 : vector<1x128xf32>
    %145 = arith.negf %144 : vector<1x128xf32>
    %146 = math.exp %145 : vector<1x128xf32>
    %cst_46 = arith.constant 1.000000e+00 : f32
    %147 = vector.broadcast %cst_46 : f32 to vector<1x128xf32>
    %148 = arith.addf %147, %146 : vector<1x128xf32>
    %149 = arith.divf %147, %148 : vector<1x128xf32>
    %150 = vector.extract_strided_slice %149 {offsets = [0, 0], sizes = [1, 32], strides = [1, 1]} : vector<1x128xf32> to vector<1x32xf32>
    %151 = vector.extract_strided_slice %149 {offsets = [0, 32], sizes = [1, 32], strides = [1, 1]} : vector<1x128xf32> to vector<1x32xf32>
    %152 = vector.extract_strided_slice %149 {offsets = [0, 64], sizes = [1, 32], strides = [1, 1]} : vector<1x128xf32> to vector<1x32xf32>
    %cst_47 = arith.constant 2.000000e+00 : f32
    %153 = vector.broadcast %cst_47 : f32 to vector<1x32xf32>
    %154 = arith.mulf %153, %152 : vector<1x32xf32>
    %cst_48 = arith.constant 1.000000e+00 : f32
    %155 = vector.broadcast %cst_48 : f32 to vector<1x32xf32>
    %156 = arith.subf %154, %155 : vector<1x32xf32>
    %157 = vector.extract_strided_slice %149 {offsets = [0, 96], sizes = [1, 32], strides = [1, 1]} : vector<1x128xf32> to vector<1x32xf32>
    %158 = arith.mulf %151, %136 : vector<1x32xf32>
    %159 = arith.mulf %150, %156 : vector<1x32xf32>
    %160 = arith.addf %158, %159 : vector<1x32xf32>
    %161 = math.tanh %160 : vector<1x32xf32>
    %162 = arith.mulf %157, %161 : vector<1x32xf32>
    %c5 = arith.constant 5 : index
    %c0_49 = arith.constant 0 : index
    %163 = vector.load %arg10[%c5, %c0_49] : memref<8x32xf32, #tpu.memory_space<vmem>>, vector<1x32xf32>
    tpu.vector_store %arg10[%c5, %c0_49], %162 {strides = array<i32>} : memref<8x32xf32, #tpu.memory_space<vmem>>, vector<1x32xf32>,
    %164 = vector.extract_strided_slice %19 {offsets = [6, 0], sizes = [1, 32], strides = [1, 1]} : vector<8x32xf32> to vector<1x32xf32>
    %165 = arith.mulf %162, %164 : vector<1x32xf32>
    %166 = vector.extract_strided_slice %6 {offsets = [6, 0], sizes = [1, 128], strides = [1, 1]} : vector<8x128xf32> to vector<1x128xf32>
    %cst_50 = arith.constant dense<0.000000e+00> : vector<1x128xf32>
    %167 = tpu.matmul %165, %0, %cst_50 {dimension_numbers = #tpu.dot_dimension_numbers<[1], [0], [0], [1], [0, 0, 1, 1], [], []>} : vector<1x32xf32>, vector<32x128xf32>, vector<1x128xf32> -> vector<1x128xf32>
    %168 = arith.addf %166, %167 : vector<1x128xf32>
    %169 = arith.negf %168 : vector<1x128xf32>
    %170 = math.exp %169 : vector<1x128xf32>
    %cst_51 = arith.constant 1.000000e+00 : f32
    %171 = vector.broadcast %cst_51 : f32 to vector<1x128xf32>
    %172 = arith.addf %171, %170 : vector<1x128xf32>
    %173 = arith.divf %171, %172 : vector<1x128xf32>
    %174 = vector.extract_strided_slice %173 {offsets = [0, 0], sizes = [1, 32], strides = [1, 1]} : vector<1x128xf32> to vector<1x32xf32>
    %175 = vector.extract_strided_slice %173 {offsets = [0, 32], sizes = [1, 32], strides = [1, 1]} : vector<1x128xf32> to vector<1x32xf32>
    %176 = vector.extract_strided_slice %173 {offsets = [0, 64], sizes = [1, 32], strides = [1, 1]} : vector<1x128xf32> to vector<1x32xf32>
    %cst_52 = arith.constant 2.000000e+00 : f32
    %177 = vector.broadcast %cst_52 : f32 to vector<1x32xf32>
    %178 = arith.mulf %177, %176 : vector<1x32xf32>
    %cst_53 = arith.constant 1.000000e+00 : f32
    %179 = vector.broadcast %cst_53 : f32 to vector<1x32xf32>
    %180 = arith.subf %178, %179 : vector<1x32xf32>
    %181 = vector.extract_strided_slice %173 {offsets = [0, 96], sizes = [1, 32], strides = [1, 1]} : vector<1x128xf32> to vector<1x32xf32>
    %182 = arith.mulf %175, %160 : vector<1x32xf32>
    %183 = arith.mulf %174, %180 : vector<1x32xf32>
    %184 = arith.addf %182, %183 : vector<1x32xf32>
    %185 = math.tanh %184 : vector<1x32xf32>
    %186 = arith.mulf %181, %185 : vector<1x32xf32>
    %c6 = arith.constant 6 : index
    %c0_54 = arith.constant 0 : index
    %187 = vector.load %arg10[%c6, %c0_54] : memref<8x32xf32, #tpu.memory_space<vmem>>, vector<1x32xf32>
    tpu.vector_store %arg10[%c6, %c0_54], %186 {strides = array<i32>} : memref<8x32xf32, #tpu.memory_space<vmem>>, vector<1x32xf32>,
    %188 = vector.extract_strided_slice %19 {offsets = [7, 0], sizes = [1, 32], strides = [1, 1]} : vector<8x32xf32> to vector<1x32xf32>
    %189 = arith.mulf %186, %188 : vector<1x32xf32>
    %190 = vector.extract_strided_slice %6 {offsets = [7, 0], sizes = [1, 128], strides = [1, 1]} : vector<8x128xf32> to vector<1x128xf32>
    %cst_55 = arith.constant dense<0.000000e+00> : vector<1x128xf32>
    %191 = tpu.matmul %189, %0, %cst_55 {dimension_numbers = #tpu.dot_dimension_numbers<[1], [0], [0], [1], [0, 0, 1, 1], [], []>} : vector<1x32xf32>, vector<32x128xf32>, vector<1x128xf32> -> vector<1x128xf32>
    %192 = arith.addf %190, %191 : vector<1x128xf32>
    %193 = arith.negf %192 : vector<1x128xf32>
    %194 = math.exp %193 : vector<1x128xf32>
    %cst_56 = arith.constant 1.000000e+00 : f32
    %195 = vector.broadcast %cst_56 : f32 to vector<1x128xf32>
    %196 = arith.addf %195, %194 : vector<1x128xf32>
    %197 = arith.divf %195, %196 : vector<1x128xf32>
    %198 = vector.extract_strided_slice %197 {offsets = [0, 0], sizes = [1, 32], strides = [1, 1]} : vector<1x128xf32> to vector<1x32xf32>
    %199 = vector.extract_strided_slice %197 {offsets = [0, 32], sizes = [1, 32], strides = [1, 1]} : vector<1x128xf32> to vector<1x32xf32>
    %200 = vector.extract_strided_slice %197 {offsets = [0, 64], sizes = [1, 32], strides = [1, 1]} : vector<1x128xf32> to vector<1x32xf32>
    %cst_57 = arith.constant 2.000000e+00 : f32
    %201 = vector.broadcast %cst_57 : f32 to vector<1x32xf32>
    %202 = arith.mulf %201, %200 : vector<1x32xf32>
    %cst_58 = arith.constant 1.000000e+00 : f32
    %203 = vector.broadcast %cst_58 : f32 to vector<1x32xf32>
    %204 = arith.subf %202, %203 : vector<1x32xf32>
    %205 = vector.extract_strided_slice %197 {offsets = [0, 96], sizes = [1, 32], strides = [1, 1]} : vector<1x128xf32> to vector<1x32xf32>
    %206 = arith.mulf %199, %184 : vector<1x32xf32>
    %207 = arith.mulf %198, %204 : vector<1x32xf32>
    %208 = arith.addf %206, %207 : vector<1x32xf32>
    %209 = math.tanh %208 : vector<1x32xf32>
    %210 = arith.mulf %205, %209 : vector<1x32xf32>
    %c7 = arith.constant 7 : index
    %c0_59 = arith.constant 0 : index
    %211 = vector.load %arg10[%c7, %c0_59] : memref<8x32xf32, #tpu.memory_space<vmem>>, vector<1x32xf32>
    tpu.vector_store %arg10[%c7, %c0_59], %210 {strides = array<i32>} : memref<8x32xf32, #tpu.memory_space<vmem>>, vector<1x32xf32>,
    %c0_60 = arith.constant 0 : index
    %c0_61 = arith.constant 0 : index
    %212 = vector.load %arg10[%c0_60, %c0_61] : memref<8x32xf32, #tpu.memory_space<vmem>>, vector<8x32xf32>
    %213 = vector.broadcast %210 : vector<1x32xf32> to vector<8x32xf32>
    %214 = arith.mulf %212, %213 : vector<8x32xf32>
    %cst_62 = arith.constant dense<0.000000e+00> : vector<8xf32>
    %215 = vector.multi_reduction <add>, %214, %cst_62 [1] : vector<8x32xf32> to vector<8xf32>
    %216 = vector.shape_cast %215 : vector<8xf32> to vector<8x1xf32>
    %cst_63 = arith.constant dense<0xFF800000> : vector<1xf32>
    %217 = vector.multi_reduction <maximumf>, %216, %cst_63 [0] : vector<8x1xf32> to vector<1xf32>
    %218 = vector.shape_cast %217 : vector<1xf32> to vector<1x1xf32>
    %219 = vector.broadcast %218 : vector<1x1xf32> to vector<8x1xf32>
    %220 = arith.subf %216, %219 : vector<8x1xf32>
    %221 = math.exp %220 : vector<8x1xf32>
    %cst_64 = arith.constant dense<0.000000e+00> : vector<1xf32>
    %222 = vector.multi_reduction <add>, %221, %cst_64 [0] : vector<8x1xf32> to vector<1xf32>
    %223 = vector.shape_cast %222 : vector<1xf32> to vector<1x1xf32>
    %224 = vector.broadcast %223 : vector<1x1xf32> to vector<8x1xf32>
    %225 = arith.divf %221, %224 : vector<8x1xf32>
    %226 = vector.broadcast %225 : vector<8x1xf32> to vector<8x32xf32>
    %227 = arith.mulf %226, %212 : vector<8x32xf32>
    %cst_65 = arith.constant dense<0.000000e+00> : vector<32xf32>
    %228 = vector.multi_reduction <add>, %227, %cst_65 [0] : vector<8x32xf32> to vector<32xf32>
    %229 = vector.shape_cast %228 : vector<32xf32> to vector<1x32xf32>
    %c0_66 = arith.constant 0 : index
    %c0_67 = arith.constant 0 : index
    %230 = vector.load %arg9[%c0_66, %c0_67] : memref<1x32xf32, #tpu.memory_space<vmem>>, vector<1x32xf32>
    tpu.vector_store %arg9[%c0_66, %c0_67], %229 {strides = array<i32>} : memref<1x32xf32, #tpu.memory_space<vmem>>, vector<1x32xf32>,
    return
  }
}

</mosaic_0001>

<llo_original>
// kernel: lstm1_forward.1
$region0: #{lstm1_forward.1}
  #allocation0 [shape = 'u32[]', space=smem, size = 0x4, offset = 0x4, fixed_abs, tag = 'smem constant byte address 0x4 - core index']
  #allocation1 [shape = 'u32[144,128]{1,0:T(1,128)}', space=vmem, size = 0x12000, scoped, tag = 'internal scratch']
  #allocation2 [shape = 'f32[8,32]{1,0:T(8,128)}', space=vmem, size = 0x1000, scoped, tag = 'scratch operand']
  %s0 = inlined_call_operand.vmem [shape: f32[8,1], index: 0, kind: input, shape index: {}]
  %s1 = inlined_call_operand.vmem [shape: f32[8,16], index: 1, kind: input, shape index: {}]
  %s2 = inlined_call_operand.vmem [shape: f32[16,128], index: 2, kind: input, shape index: {}]
  %s3 = inlined_call_operand.vmem [shape: f32[32,128], index: 3, kind: input, shape index: {}]
  %s4 = inlined_call_operand.vmem [shape: f32[1,128], index: 4, kind: input, shape index: {}]
  %s5 = inlined_call_operand.vmem [shape: f32[1,32], index: 5, kind: input, shape index: {}]
  %s6 = inlined_call_operand.vmem [shape: f32[1,32], index: 6, kind: input, shape index: {}]
  %s7 = inlined_call_operand.vmem [shape: f32[1,32], index: 7, kind: input, shape index: {}]
  %s8 = inlined_call_operand.vmem [shape: f32[1,32], index: 8, kind: input, shape index: {}]
  %s9 = inlined_call_operand.hbm [shape: f32[1,32], index: 9, kind: output, shape index: {}]
  %s10 = sld [smem:[#allocation0]]
  $region46: #{lstm1_forward.1} parent=0
    _
  %s12 = ssub.s32 1, %s10
  %s13 = scalar_select 0, %s12, %s10
  $region1: #{lstm1_forward.1} parent=0
    #allocation3 [shape = 'u8[512]{0}', space=vmem, size = 0x400, scoped, tag = 'output window, operand 0, single buffered']
    #allocation4 [shape = 's32[1]{0}', space=sflag, size = 0x4, scoped, tag = 'scoped memory for lstm1_forward.1']
    %14 = vsyncpa [#allocation4], 0
    // Predicated region
    $region2: #{lstm1_forward.1} parent=1 // pred_check
      _
    $region3: #{lstm1_forward.1} parent=1 // pred_check_branch
      %16 = sbr.rel (0) target = $region5
    $region4: #{lstm1_forward.1} parent=1 // pred_region
      _
    $region5: #{lstm1_forward.1} parent=1 // pred_fallthru
      _
    // Predicated region
    $region6: #{lstm1_forward.1} parent=1 // pred_check
      _
    $region7: #{lstm1_forward.1} parent=1 // pred_check_branch
      %18 = sbr.rel (0) target = $region9
    $region8: #{lstm1_forward.1} parent=1 // pred_region
      _
    $region9: #{lstm1_forward.1} parent=1 // pred_fallthru
      _
    // Predicated region
    $region10: #{lstm1_forward.1} parent=1 // pred_check
      _
    $region11: #{lstm1_forward.1} parent=1 // pred_check_branch
      %20 = sbr.rel (0) target = $region13
    $region12: #{lstm1_forward.1} parent=1 // pred_region
      _
    $region13: #{lstm1_forward.1} parent=1 // pred_fallthru
      _
    // Predicated region
    $region14: #{lstm1_forward.1} parent=1 // pred_check
      _
    $region15: #{lstm1_forward.1} parent=1 // pred_check_branch
      %22 = sbr.rel (0) target = $region17
    $region16: #{lstm1_forward.1} parent=1 // pred_region
      _
    $region17: #{lstm1_forward.1} parent=1 // pred_fallthru
      _
    // Predicated region
    $region18: #{lstm1_forward.1} parent=1 // pred_check
      _
    $region19: #{lstm1_forward.1} parent=1 // pred_check_branch
      %24 = sbr.rel (0) target = $region21
    $region20: #{lstm1_forward.1} parent=1 // pred_region
      _
    $region21: #{lstm1_forward.1} parent=1 // pred_fallthru
      _
    // Predicated region
    $region22: #{lstm1_forward.1} parent=1 // pred_check
      _
    $region23: #{lstm1_forward.1} parent=1 // pred_check_branch
      %26 = sbr.rel (0) target = $region25
    $region24: #{lstm1_forward.1} parent=1 // pred_region
      _
    $region25: #{lstm1_forward.1} parent=1 // pred_fallthru
      _
    // Predicated region
    $region26: #{lstm1_forward.1} parent=1 // pred_check
      _
    $region27: #{lstm1_forward.1} parent=1 // pred_check_branch
      %28 = sbr.rel (0) target = $region29
    $region28: #{lstm1_forward.1} parent=1 // pred_region
      _
    $region29: #{lstm1_forward.1} parent=1 // pred_fallthru
      _
    // Predicated region
    $region30: #{lstm1_forward.1} parent=1 // pred_check
      _
    $region31: #{lstm1_forward.1} parent=1 // pred_check_branch
      %30 = sbr.rel (0) target = $region33
    $region32: #{lstm1_forward.1} parent=1 // pred_region
      _
    $region33: #{lstm1_forward.1} parent=1 // pred_fallthru
      _
    // Predicated region
    $region34: #{lstm1_forward.1} parent=1 // pred_check
      _
    $region35: #{lstm1_forward.1} parent=1 // pred_check_branch
      %32 = sbr.rel (0) target = $region37
    $region36: #{lstm1_forward.1} parent=1 // pred_region
      _
    $region37: #{lstm1_forward.1} parent=1 // pred_fallthru
      _
    %v33 = vld [vmem:[%s3] sm:$0xff]
    %v34 = vld [vmem:[%s3 + $0x8] sm:$0xff]
    %v35 = vld [vmem:[%s3 + $0x10] sm:$0xff]
    %v36 = vld [vmem:[%s3 + $0x18] sm:$0xff]
    %v37 = vld [vmem:[%s1] sm:$0xff]
    %v38 = vld [vmem:[%s2] sm:$0xff]
    %v39 = vld [vmem:[%s2 + $0x8] sm:$0xff]
    %v40 = vld [vmem:[%s4] sm:$0x1]
    %v42 = vlaneseq
    %v43 = vshrl.u32 %v42, 7
    %v44 = vsub.s32 0, %v43
    %v45 = vrot.slane %v40, %v44
    %vm47 = vcmask 130048
    %v49 = vsel %vm47, %v37, 0
    %51 = vmatprep.subr.mxu0 0.0
    %52 = vmatpush1.msra.mxu0 0.0
    %53 = vmatprep.subr.mxu0 0.0
    %54 = vmatpush1.msra.mxu0 0.0
    %55 = vmatprep.subr.mxu0 0.0
    %56 = vmatpush1.msra.mxu0 0.0
    %57 = vmatprep.subr.mxu0 0.0
    %58 = vmatpush1.msra.mxu0 0.0
    %59 = vmatprep.subr.mxu0 0.0
    %60 = vmatpush1.msra.mxu0 0.0
    %61 = vmatprep.subr.mxu0 0.0
    %62 = vmatpush1.msra.mxu0 0.0
    %63 = vmatprep.subr.mxu0 0.0
    %64 = vmatpush1.msra.mxu0 0.0
    %65 = vmatprep.subr.mxu0 0.0
    %66 = vmatpush1.msra.mxu0 0.0
    %67 = vmatprep.subr.mxu0 0.0
    %68 = vmatpush1.msra.mxu0 0.0
    %69 = vmatprep.subr.mxu0 0.0
    %70 = vmatpush1.msra.mxu0 0.0
    %71 = vmatprep.subr.mxu0 0.0
    %72 = vmatpush1.msra.mxu0 0.0
    %73 = vmatprep.subr.mxu0 0.0
    %74 = vmatpush1.msra.mxu0 0.0
    %75 = vmatprep.subr.mxu0 0.0
    %76 = vmatpush1.msra.mxu0 0.0
    %77 = vmatprep.subr.mxu0 0.0
    %78 = vmatpush1.msra.mxu0 0.0
    %79 = vmatprep.subr.mxu0 0.0
    %80 = vmatpush1.msra.mxu0 %v39
    %81 = vmatprep.subr.mxu0 0.0
    %82 = vmatpush1.msra.mxu0 %v38
    %83 = vmatprep.subr.mxu0 0.0
    %84 = vmatpush2.msra.mxu0 0.0
    %85 = vmatprep.subr.mxu0 0.0
    %86 = vmatpush2.msra.mxu0 0.0
    %87 = vmatprep.subr.mxu0 0.0
    %88 = vmatpush2.msra.mxu0 0.0
    %89 = vmatprep.subr.mxu0 0.0
    %90 = vmatpush2.msra.mxu0 0.0
    %91 = vmatprep.subr.mxu0 0.0
    %92 = vmatpush2.msra.mxu0 0.0
    %93 = vmatprep.subr.mxu0 0.0
    %94 = vmatpush2.msra.mxu0 0.0
    %95 = vmatprep.subr.mxu0 0.0
    %96 = vmatpush2.msra.mxu0 0.0
    %97 = vmatprep.subr.mxu0 0.0
    %98 = vmatpush2.msra.mxu0 0.0
    %99 = vmatprep.subr.mxu0 0.0
    %100 = vmatpush2.msra.mxu0 0.0
    %101 = vmatprep.subr.mxu0 0.0
    %102 = vmatpush2.msra.mxu0 0.0
    %103 = vmatprep.subr.mxu0 0.0
    %104 = vmatpush2.msra.mxu0 0.0
    %105 = vmatprep.subr.mxu0 0.0
    %106 = vmatpush2.msra.mxu0 0.0
    %107 = vmatprep.subr.mxu0 0.0
    %108 = vmatpush2.msra.mxu0 0.0
    %109 = vmatprep.subr.mxu0 0.0
    %110 = vmatpush2.msra.mxu0 0.0
    %111 = vmatprep.subr.mxu0 0.0
    %112 = vmatpush2.msra.mxu0 0.0
    %113 = vmatprep.subr.mxu0 0.0
    %114 = vmatpush2.msra.mxu0 0.0
    %115 = vmatprep.mubr.f32.mxu0 0.0
    %116 = vmatmul.mubr.f32.gmra.mxu0 %v49
    %v117 = vpop.f32.mrf.mxu0
    %v118 = vadd.f32 %v45, %v117
    %v119 = vpop.f32.mrf.mxu0
    %120 = vdwg.mxu0
    %v121 = vld [vmem:[%s0] sm:$0xff]
    %v122 = vld [vmem:[%s5] sm:$0x1]
    %124 = vset.pattern.permute.xlu0 0
    %125 = vperm.xlu0 %124, %v121
    %v126 = vpop.permute.xlu0 %125
    %v129 = vlaneseq
    %v130 = vshrl.u32 %v129, 7
    %v131 = vsub.s32 0, %v130
    %v132 = vrot.slane %v122, %v131
    %v134 = vmul.f32 %v126, %v132
    %v135 = vld [vmem:[%s6] sm:$0x1]
    %v137 = vlaneseq
    %v138 = vshrl.u32 %v137, 7
    %v139 = vsub.s32 0, %v138
    %v140 = vrot.slane %v135, %v139
    %v142 = vadd.f32 %v134, %v140
    %v143 = vmax.f32 %v142, 0.0
    %v144 = vsub.f32 0.0, %v143
    %v145 = vmul.f32 %v144, 1.442695
    %v146 = vpow.pop %v145
    %v147 = vld [vmem:[%s7] sm:$0x1]
    %v148 = vld [vmem:[%s8] sm:$0x1]
    %vm149 = vcmask 261120
    %v151 = vsel %vm149, %v147, 0
    %153 = vmatprep.subr.mxu0 0.0
    %154 = vmatpush1.msra.mxu0 0.0
    %155 = vmatprep.subr.mxu0 0.0
    %156 = vmatpush1.msra.mxu0 0.0
    %157 = vmatprep.subr.mxu0 0.0
    %158 = vmatpush1.msra.mxu0 0.0
    %159 = vmatprep.subr.mxu0 0.0
    %160 = vmatpush1.msra.mxu0 0.0
    %161 = vmatprep.subr.mxu0 0.0
    %162 = vmatpush1.msra.mxu0 0.0
    %163 = vmatprep.subr.mxu0 0.0
    %164 = vmatpush1.msra.mxu0 0.0
    %165 = vmatprep.subr.mxu0 0.0
    %166 = vmatpush1.msra.mxu0 0.0
    %167 = vmatprep.subr.mxu0 0.0
    %168 = vmatpush1.msra.mxu0 0.0
    %169 = vmatprep.subr.mxu0 0.0
    %170 = vmatpush1.msra.mxu0 0.0
    %171 = vmatprep.subr.mxu0 0.0
    %172 = vmatpush1.msra.mxu0 0.0
    %173 = vmatprep.subr.mxu0 0.0
    %174 = vmatpush1.msra.mxu0 0.0
    %175 = vmatprep.subr.mxu0 0.0
    %176 = vmatpush1.msra.mxu0 0.0
    %177 = vmatprep.subr.mxu0 0.0
    %178 = vmatpush1.msra.mxu0 %v36
    %179 = vmatprep.subr.mxu0 0.0
    %180 = vmatpush1.msra.mxu0 %v35
    %181 = vmatprep.subr.mxu0 0.0
    %182 = vmatpush1.msra.mxu0 %v34
    %183 = vmatprep.subr.mxu0 0.0
    %184 = vmatpush1.msra.mxu0 %v33
    %185 = vmatprep.subr.mxu0 0.0
    %186 = vmatpush2.msra.mxu0 0.0
    %187 = vmatprep.subr.mxu0 0.0
    %188 = vmatpush2.msra.mxu0 0.0
    %189 = vmatprep.subr.mxu0 0.0
    %190 = vmatpush2.msra.mxu0 0.0
    %191 = vmatprep.subr.mxu0 0.0
    %192 = vmatpush2.msra.mxu0 0.0
    %193 = vmatprep.subr.mxu0 0.0
    %194 = vmatpush2.msra.mxu0 0.0
    %195 = vmatprep.subr.mxu0 0.0
    %196 = vmatpush2.msra.mxu0 0.0
    %197 = vmatprep.subr.mxu0 0.0
    %198 = vmatpush2.msra.mxu0 0.0
    %199 = vmatprep.subr.mxu0 0.0
    %200 = vmatpush2.msra.mxu0 0.0
    %201 = vmatprep.subr.mxu0 0.0
    %202 = vmatpush2.msra.mxu0 0.0
    %203 = vmatprep.subr.mxu0 0.0
    %204 = vmatpush2.msra.mxu0 0.0
    %205 = vmatprep.subr.mxu0 0.0
    %206 = vmatpush2.msra.mxu0 0.0
    %207 = vmatprep.subr.mxu0 0.0
    %208 = vmatpush2.msra.mxu0 0.0
    %209 = vmatprep.subr.mxu0 0.0
    %210 = vmatpush2.msra.mxu0 0.0
    %211 = vmatprep.subr.mxu0 0.0
    %212 = vmatpush2.msra.mxu0 0.0
    %213 = vmatprep.subr.mxu0 0.0
    %214 = vmatpush2.msra.mxu0 0.0
    %215 = vmatprep.subr.mxu0 0.0
    %216 = vmatpush2.msra.mxu0 0.0
    %217 = vmatprep.mubr.f32.mxu0 0.0
    %218 = vmatmul.mubr.f32.gmra.mxu0 %v151
    %v219 = vpop.f32.mrf.mxu0
    %v220 = vadd.f32 0.0, %v219
    %v221 = vpop.f32.mrf.mxu0
    %222 = vdwg.mxu0
    %v223 = vadd.f32 %v118, %v220
    %v224 = vxor.u32 %v223, 2147483648
    %v225 = vmul.f32 %v224, 1.442695
    %v226 = vpow.pop %v225
    %v227 = vadd.f32 %v226, 1.0
    %v228 = vrcp.pop %v227
    %v229 = vmul.f32 1.0, %v228
    %v230 = vmul.f32 %v229, 2.0
    %v231 = vsub.f32 %v230, 1.0
    %v233 = vlaneseq
    %v234 = vshrl.u32 %v233, 7
    %v235 = vsub.s32 0, %v234
    %v236 = vrot.slane %v148, %v235
    %237 = vrot.lane.b32.xlu0 %v236, 32
    %v238 = vpop.permute.xlu0 %237
    %v240 = vmul.f32 %v229, %v238
    %242 = vrot.lane.b32.xlu0 %v231, 64
    %v243 = vpop.permute.xlu0 %242
    %v245 = vmul.f32 %v229, %v243
    %247 = vrot.lane.b32.xlu0 %v245, 32
    %v248 = vpop.permute.xlu0 %247
    %v250 = vadd.f32 %v240, %v248
    %v251 = vtanh.pop %v250
    %253 = vrot.lane.b32.xlu0 %v251, 64
    %v254 = vpop.permute.xlu0 %253
    %v256 = vmul.f32 %v229, %v254
    %258 = vrot.lane.b32.xlu0 %v256, 32
    %v259 = vpop.permute.xlu0 %258
    %vm261 = vcmask 253952
    %262 = vst.msk [vmem:[#allocation2] sm:$0x1] %vm261, %v259
    %v264 = vrot.slane %v146, 1
    %265 = vrot.lane.b32.xlu0 %v264, 96
    %v266 = vpop.permute.xlu0 %265
    %v268 = vmul.f32 %v256, %v266
    %270 = vrot.lane.b32.xlu0 %v268, 32
    %v271 = vpop.permute.xlu0 %270
    %v272 = vsel %vm149, %v271, 0
    %274 = vmatprep.subr.mxu0 0.0
    %275 = vmatpush1.msra.mxu0 0.0
    %276 = vmatprep.subr.mxu0 0.0
    %277 = vmatpush1.msra.mxu0 0.0
    %278 = vmatprep.subr.mxu0 0.0
    %279 = vmatpush1.msra.mxu0 0.0
    %280 = vmatprep.subr.mxu0 0.0
    %281 = vmatpush1.msra.mxu0 0.0
    %282 = vmatprep.subr.mxu0 0.0
    %283 = vmatpush1.msra.mxu0 0.0
    %284 = vmatprep.subr.mxu0 0.0
    %285 = vmatpush1.msra.mxu0 0.0
    %286 = vmatprep.subr.mxu0 0.0
    %287 = vmatpush1.msra.mxu0 0.0
    %288 = vmatprep.subr.mxu0 0.0
    %289 = vmatpush1.msra.mxu0 0.0
    %290 = vmatprep.subr.mxu0 0.0
    %291 = vmatpush1.msra.mxu0 0.0
    %292 = vmatprep.subr.mxu0 0.0
    %293 = vmatpush1.msra.mxu0 0.0
    %294 = vmatprep.subr.mxu0 0.0
    %295 = vmatpush1.msra.mxu0 0.0
    %296 = vmatprep.subr.mxu0 0.0
    %297 = vmatpush1.msra.mxu0 0.0
    %298 = vmatprep.subr.mxu0 0.0
    %299 = vmatpush1.msra.mxu0 %v36
    %300 = vmatprep.subr.mxu0 0.0
    %301 = vmatpush1.msra.mxu0 %v35
    %302 = vmatprep.subr.mxu0 0.0
    %303 = vmatpush1.msra.mxu0 %v34
    %304 = vmatprep.subr.mxu0 0.0
    %305 = vmatpush1.msra.mxu0 %v33
    %306 = vmatprep.subr.mxu0 0.0
    %307 = vmatpush2.msra.mxu0 0.0
    %308 = vmatprep.subr.mxu0 0.0
    %309 = vmatpush2.msra.mxu0 0.0
    %310 = vmatprep.subr.mxu0 0.0
    %311 = vmatpush2.msra.mxu0 0.0
    %312 = vmatprep.subr.mxu0 0.0
    %313 = vmatpush2.msra.mxu0 0.0
    %314 = vmatprep.subr.mxu0 0.0
    %315 = vmatpush2.msra.mxu0 0.0
    %316 = vmatprep.subr.mxu0 0.0
    %317 = vmatpush2.msra.mxu0 0.0
    %318 = vmatprep.subr.mxu0 0.0
    %319 = vmatpush2.msra.mxu0 0.0
    %320 = vmatprep.subr.mxu0 0.0
    %321 = vmatpush2.msra.mxu0 0.0
    %322 = vmatprep.subr.mxu0 0.0
    %323 = vmatpush2.msra.mxu0 0.0
    %324 = vmatprep.subr.mxu0 0.0
    %325 = vmatpush2.msra.mxu0 0.0
    %326 = vmatprep.subr.mxu0 0.0
    %327 = vmatpush2.msra.mxu0 0.0
    %328 = vmatprep.subr.mxu0 0.0
    %329 = vmatpush2.msra.mxu0 0.0
    %330 = vmatprep.subr.mxu0 0.0
    %331 = vmatpush2.msra.mxu0 0.0
    %332 = vmatprep.subr.mxu0 0.0
    %333 = vmatpush2.msra.mxu0 0.0
    %334 = vmatprep.subr.mxu0 0.0
    %335 = vmatpush2.msra.mxu0 0.0
    %336 = vmatprep.subr.mxu0 0.0
    %337 = vmatpush2.msra.mxu0 0.0
    %338 = vmatprep.mubr.f32.mxu0 0.0
    %339 = vmatmul.mubr.f32.gmra.mxu0 %v272
    %v340 = vpop.f32.mrf.mxu0
    %v341 = vadd.f32 0.0, %v340
    %v342 = vpop.f32.mrf.mxu0
    %343 = vdwg.mxu0
    %v345 = vrot.slane %v341, 7
    %v347 = vadd.f32 %v118, %v345
    %v348 = vxor.u32 %v347, 2147483648
    %v349 = vmul.f32 %v348, 1.442695
    %v350 = vpow.pop %v349
    %v351 = vadd.f32 %v350, 1.0
    %v352 = vrcp.pop %v351
    %v353 = vmul.f32 1.0, %v352
    %v354 = vmul.f32 %v353, 2.0
    %v355 = vsub.f32 %v354, 1.0
    %v357 = vrot.slane %v250, 7
    %v359 = vmul.f32 %v353, %v357
    %361 = vrot.lane.b32.xlu0 %v355, 64
    %v362 = vpop.permute.xlu0 %361
    %v364 = vmul.f32 %v353, %v362
    %366 = vrot.lane.b32.xlu0 %v364, 32
    %v367 = vpop.permute.xlu0 %366
    %v369 = vadd.f32 %v359, %v367
    %v370 = vtanh.pop %v369
    %372 = vrot.lane.b32.xlu0 %v370, 64
    %v373 = vpop.permute.xlu0 %372
    %v375 = vmul.f32 %v353, %v373
    %377 = vrot.lane.b32.xlu0 %v375, 32
    %v378 = vpop.permute.xlu0 %377
    %vm380 = vcmask 254977
    %381 = vst.msk [vmem:[#allocation2] sm:$0x2] %vm380, %v378
    %v382 = vmul.f32 %v375, %v266
    %v384 = vrot.slane %v382, 1
    %385 = vrot.lane.b32.xlu0 %v384, 32
    %v386 = vpop.permute.xlu0 %385
    %v387 = vsel %vm149, %v386, 0
    %389 = vmatprep.subr.mxu0 0.0
    %390 = vmatpush1.msra.mxu0 0.0
    %391 = vmatprep.subr.mxu0 0.0
    %392 = vmatpush1.msra.mxu0 0.0
    %393 = vmatprep.subr.mxu0 0.0
    %394 = vmatpush1.msra.mxu0 0.0
    %395 = vmatprep.subr.mxu0 0.0
    %396 = vmatpush1.msra.mxu0 0.0
    %397 = vmatprep.subr.mxu0 0.0
    %398 = vmatpush1.msra.mxu0 0.0
    %399 = vmatprep.subr.mxu0 0.0
    %400 = vmatpush1.msra.mxu0 0.0
    %401 = vmatprep.subr.mxu0 0.0
    %402 = vmatpush1.msra.mxu0 0.0
    %403 = vmatprep.subr.mxu0 0.0
    %404 = vmatpush1.msra.mxu0 0.0
    %405 = vmatprep.subr.mxu0 0.0
    %406 = vmatpush1.msra.mxu0 0.0
    %407 = vmatprep.subr.mxu0 0.0
    %408 = vmatpush1.msra.mxu0 0.0
    %409 = vmatprep.subr.mxu0 0.0
    %410 = vmatpush1.msra.mxu0 0.0
    %411 = vmatprep.subr.mxu0 0.0
    %412 = vmatpush1.msra.mxu0 0.0
    %413 = vmatprep.subr.mxu0 0.0
    %414 = vmatpush1.msra.mxu0 %v36
    %415 = vmatprep.subr.mxu0 0.0
    %416 = vmatpush1.msra.mxu0 %v35
    %417 = vmatprep.subr.mxu0 0.0
    %418 = vmatpush1.msra.mxu0 %v34
    %419 = vmatprep.subr.mxu0 0.0
    %420 = vmatpush1.msra.mxu0 %v33
    %421 = vmatprep.subr.mxu0 0.0
    %422 = vmatpush2.msra.mxu0 0.0
    %423 = vmatprep.subr.mxu0 0.0
    %424 = vmatpush2.msra.mxu0 0.0
    %425 = vmatprep.subr.mxu0 0.0
    %426 = vmatpush2.msra.mxu0 0.0
    %427 = vmatprep.subr.mxu0 0.0
    %428 = vmatpush2.msra.mxu0 0.0
    %429 = vmatprep.subr.mxu0 0.0
    %430 = vmatpush2.msra.mxu0 0.0
    %431 = vmatprep.subr.mxu0 0.0
    %432 = vmatpush2.msra.mxu0 0.0
    %433 = vmatprep.subr.mxu0 0.0
    %434 = vmatpush2.msra.mxu0 0.0
    %435 = vmatprep.subr.mxu0 0.0
    %436 = vmatpush2.msra.mxu0 0.0
    %437 = vmatprep.subr.mxu0 0.0
    %438 = vmatpush2.msra.mxu0 0.0
    %439 = vmatprep.subr.mxu0 0.0
    %440 = vmatpush2.msra.mxu0 0.0
    %441 = vmatprep.subr.mxu0 0.0
    %442 = vmatpush2.msra.mxu0 0.0
    %443 = vmatprep.subr.mxu0 0.0
    %444 = vmatpush2.msra.mxu0 0.0
    %445 = vmatprep.subr.mxu0 0.0
    %446 = vmatpush2.msra.mxu0 0.0
    %447 = vmatprep.subr.mxu0 0.0
    %448 = vmatpush2.msra.mxu0 0.0
    %449 = vmatprep.subr.mxu0 0.0
    %450 = vmatpush2.msra.mxu0 0.0
    %451 = vmatprep.subr.mxu0 0.0
    %452 = vmatpush2.msra.mxu0 0.0
    %453 = vmatprep.mubr.f32.mxu0 0.0
    %454 = vmatmul.mubr.f32.gmra.mxu0 %v387
    %v455 = vpop.f32.mrf.mxu0
    %v456 = vadd.f32 0.0, %v455
    %v457 = vpop.f32.mrf.mxu0
    %458 = vdwg.mxu0
    %v460 = vrot.slane %v456, 6
    %v462 = vadd.f32 %v118, %v460
    %v463 = vxor.u32 %v462, 2147483648
    %v464 = vmul.f32 %v463, 1.442695
    %v465 = vpow.pop %v464
    %v466 = vadd.f32 %v465, 1.0
    %v467 = vrcp.pop %v466
    %v468 = vmul.f32 1.0, %v467
    %v469 = vmul.f32 %v468, 2.0
    %v470 = vsub.f32 %v469, 1.0
    %v472 = vrot.slane %v369, 7
    %v474 = vmul.f32 %v468, %v472
    %476 = vrot.lane.b32.xlu0 %v470, 64
    %v477 = vpop.permute.xlu0 %476
    %v479 = vmul.f32 %v468, %v477
    %481 = vrot.lane.b32.xlu0 %v479, 32
    %v482 = vpop.permute.xlu0 %481
    %v484 = vadd.f32 %v474, %v482
    %v485 = vtanh.pop %v484
    %487 = vrot.lane.b32.xlu0 %v485, 64
    %v488 = vpop.permute.xlu0 %487
    %v490 = vmul.f32 %v468, %v488
    %492 = vrot.lane.b32.xlu0 %v490, 32
    %v493 = vpop.permute.xlu0 %492
    %vm495 = vcmask 256002
    %496 = vst.msk [vmem:[#allocation2] sm:$0x4] %vm495, %v493
    %v497 = vmul.f32 %v490, %v266
    %v499 = vrot.slane %v497, 2
    %500 = vrot.lane.b32.xlu0 %v499, 32
    %v501 = vpop.permute.xlu0 %500
    %v502 = vsel %vm149, %v501, 0
    %504 = vmatprep.subr.mxu0 0.0
    %505 = vmatpush1.msra.mxu0 0.0
    %506 = vmatprep.subr.mxu0 0.0
    %507 = vmatpush1.msra.mxu0 0.0
    %508 = vmatprep.subr.mxu0 0.0
    %509 = vmatpush1.msra.mxu0 0.0
    %510 = vmatprep.subr.mxu0 0.0
    %511 = vmatpush1.msra.mxu0 0.0
    %512 = vmatprep.subr.mxu0 0.0
    %513 = vmatpush1.msra.mxu0 0.0
    %514 = vmatprep.subr.mxu0 0.0
    %515 = vmatpush1.msra.mxu0 0.0
    %516 = vmatprep.subr.mxu0 0.0
    %517 = vmatpush1.msra.mxu0 0.0
    %518 = vmatprep.subr.mxu0 0.0
    %519 = vmatpush1.msra.mxu0 0.0
    %520 = vmatprep.subr.mxu0 0.0
    %521 = vmatpush1.msra.mxu0 0.0
    %522 = vmatprep.subr.mxu0 0.0
    %523 = vmatpush1.msra.mxu0 0.0
    %524 = vmatprep.subr.mxu0 0.0
    %525 = vmatpush1.msra.mxu0 0.0
    %526 = vmatprep.subr.mxu0 0.0
    %527 = vmatpush1.msra.mxu0 0.0
    %528 = vmatprep.subr.mxu0 0.0
    %529 = vmatpush1.msra.mxu0 %v36
    %530 = vmatprep.subr.mxu0 0.0
    %531 = vmatpush1.msra.mxu0 %v35
    %532 = vmatprep.subr.mxu0 0.0
    %533 = vmatpush1.msra.mxu0 %v34
    %534 = vmatprep.subr.mxu0 0.0
    %535 = vmatpush1.msra.mxu0 %v33
    %536 = vmatprep.subr.mxu0 0.0
    %537 = vmatpush2.msra.mxu0 0.0
    %538 = vmatprep.subr.mxu0 0.0
    %539 = vmatpush2.msra.mxu0 0.0
    %540 = vmatprep.subr.mxu0 0.0
    %541 = vmatpush2.msra.mxu0 0.0
    %542 = vmatprep.subr.mxu0 0.0
    %543 = vmatpush2.msra.mxu0 0.0
    %544 = vmatprep.subr.mxu0 0.0
    %545 = vmatpush2.msra.mxu0 0.0
    %546 = vmatprep.subr.mxu0 0.0
    %547 = vmatpush2.msra.mxu0 0.0
    %548 = vmatprep.subr.mxu0 0.0
    %549 = vmatpush2.msra.mxu0 0.0
    %550 = vmatprep.subr.mxu0 0.0
    %551 = vmatpush2.msra.mxu0 0.0
    %552 = vmatprep.subr.mxu0 0.0
    %553 = vmatpush2.msra.mxu0 0.0
    %554 = vmatprep.subr.mxu0 0.0
    %555 = vmatpush2.msra.mxu0 0.0
    %556 = vmatprep.subr.mxu0 0.0
    %557 = vmatpush2.msra.mxu0 0.0
    %558 = vmatprep.subr.mxu0 0.0
    %559 = vmatpush2.msra.mxu0 0.0
    %560 = vmatprep.subr.mxu0 0.0
    %561 = vmatpush2.msra.mxu0 0.0
    %562 = vmatprep.subr.mxu0 0.0
    %563 = vmatpush2.msra.mxu0 0.0
    %564 = vmatprep.subr.mxu0 0.0
    %565 = vmatpush2.msra.mxu0 0.0
    %566 = vmatprep.subr.mxu0 0.0
    %567 = vmatpush2.msra.mxu0 0.0
    %568 = vmatprep.mubr.f32.mxu0 0.0
    %569 = vmatmul.mubr.f32.gmra.mxu0 %v502
    %v570 = vpop.f32.mrf.mxu0
    %v571 = vadd.f32 0.0, %v570
    %v572 = vpop.f32.mrf.mxu0
    %573 = vdwg.mxu0
    %v575 = vrot.slane %v571, 5
    %v577 = vadd.f32 %v118, %v575
    %v578 = vxor.u32 %v577, 2147483648
    %v579 = vmul.f32 %v578, 1.442695
    %v580 = vpow.pop %v579
    %v581 = vadd.f32 %v580, 1.0
    %v582 = vrcp.pop %v581
    %v583 = vmul.f32 1.0, %v582
    %v584 = vmul.f32 %v583, 2.0
    %v585 = vsub.f32 %v584, 1.0
    %v587 = vrot.slane %v484, 7
    %v589 = vmul.f32 %v583, %v587
    %591 = vrot.lane.b32.xlu0 %v585, 64
    %v592 = vpop.permute.xlu0 %591
    %v594 = vmul.f32 %v583, %v592
    %596 = vrot.lane.b32.xlu0 %v594, 32
    %v597 = vpop.permute.xlu0 %596
    %v599 = vadd.f32 %v589, %v597
    %v600 = vtanh.pop %v599
    %602 = vrot.lane.b32.xlu0 %v600, 64
    %v603 = vpop.permute.xlu0 %602
    %v605 = vmul.f32 %v583, %v603
    %607 = vrot.lane.b32.xlu0 %v605, 32
    %v608 = vpop.permute.xlu0 %607
    %vm610 = vcmask 257027
    %611 = vst.msk [vmem:[#allocation2] sm:$0x8] %vm610, %v608
    %v612 = vmul.f32 %v605, %v266
    %v614 = vrot.slane %v612, 3
    %615 = vrot.lane.b32.xlu0 %v614, 32
    %v616 = vpop.permute.xlu0 %615
    %v617 = vsel %vm149, %v616, 0
    %619 = vmatprep.subr.mxu0 0.0
    %620 = vmatpush1.msra.mxu0 0.0
    %621 = vmatprep.subr.mxu0 0.0
    %622 = vmatpush1.msra.mxu0 0.0
    %623 = vmatprep.subr.mxu0 0.0
    %624 = vmatpush1.msra.mxu0 0.0
    %625 = vmatprep.subr.mxu0 0.0
    %626 = vmatpush1.msra.mxu0 0.0
    %627 = vmatprep.subr.mxu0 0.0
    %628 = vmatpush1.msra.mxu0 0.0
    %629 = vmatprep.subr.mxu0 0.0
    %630 = vmatpush1.msra.mxu0 0.0
    %631 = vmatprep.subr.mxu0 0.0
    %632 = vmatpush1.msra.mxu0 0.0
    %633 = vmatprep.subr.mxu0 0.0
    %634 = vmatpush1.msra.mxu0 0.0
    %635 = vmatprep.subr.mxu0 0.0
    %636 = vmatpush1.msra.mxu0 0.0
    %637 = vmatprep.subr.mxu0 0.0
    %638 = vmatpush1.msra.mxu0 0.0
    %639 = vmatprep.subr.mxu0 0.0
    %640 = vmatpush1.msra.mxu0 0.0
    %641 = vmatprep.subr.mxu0 0.0
    %642 = vmatpush1.msra.mxu0 0.0
    %643 = vmatprep.subr.mxu0 0.0
    %644 = vmatpush1.msra.mxu0 %v36
    %645 = vmatprep.subr.mxu0 0.0
    %646 = vmatpush1.msra.mxu0 %v35
    %647 = vmatprep.subr.mxu0 0.0
    %648 = vmatpush1.msra.mxu0 %v34
    %649 = vmatprep.subr.mxu0 0.0
    %650 = vmatpush1.msra.mxu0 %v33
    %651 = vmatprep.subr.mxu0 0.0
    %652 = vmatpush2.msra.mxu0 0.0
    %653 = vmatprep.subr.mxu0 0.0
    %654 = vmatpush2.msra.mxu0 0.0
    %655 = vmatprep.subr.mxu0 0.0
    %656 = vmatpush2.msra.mxu0 0.0
    %657 = vmatprep.subr.mxu0 0.0
    %658 = vmatpush2.msra.mxu0 0.0
    %659 = vmatprep.subr.mxu0 0.0
    %660 = vmatpush2.msra.mxu0 0.0
    %661 = vmatprep.subr.mxu0 0.0
    %662 = vmatpush2.msra.mxu0 0.0
    %663 = vmatprep.subr.mxu0 0.0
    %664 = vmatpush2.msra.mxu0 0.0
    %665 = vmatprep.subr.mxu0 0.0
    %666 = vmatpush2.msra.mxu0 0.0
    %667 = vmatprep.subr.mxu0 0.0
    %668 = vmatpush2.msra.mxu0 0.0
    %669 = vmatprep.subr.mxu0 0.0
    %670 = vmatpush2.msra.mxu0 0.0
    %671 = vmatprep.subr.mxu0 0.0
    %672 = vmatpush2.msra.mxu0 0.0
    %673 = vmatprep.subr.mxu0 0.0
    %674 = vmatpush2.msra.mxu0 0.0
    %675 = vmatprep.subr.mxu0 0.0
    %676 = vmatpush2.msra.mxu0 0.0
    %677 = vmatprep.subr.mxu0 0.0
    %678 = vmatpush2.msra.mxu0 0.0
    %679 = vmatprep.subr.mxu0 0.0
    %680 = vmatpush2.msra.mxu0 0.0
    %681 = vmatprep.subr.mxu0 0.0
    %682 = vmatpush2.msra.mxu0 0.0
    %683 = vmatprep.mubr.f32.mxu0 0.0
    %684 = vmatmul.mubr.f32.gmra.mxu0 %v617
    %v685 = vpop.f32.mrf.mxu0
    %v686 = vadd.f32 0.0, %v685
    %v687 = vpop.f32.mrf.mxu0
    %688 = vdwg.mxu0
    %v690 = vrot.slane %v686, 4
    %v692 = vadd.f32 %v118, %v690
    %v693 = vxor.u32 %v692, 2147483648
    %v694 = vmul.f32 %v693, 1.442695
    %v695 = vpow.pop %v694
    %v696 = vadd.f32 %v695, 1.0
    %v697 = vrcp.pop %v696
    %v698 = vmul.f32 1.0, %v697
    %v699 = vmul.f32 %v698, 2.0
    %v700 = vsub.f32 %v699, 1.0
    %v702 = vrot.slane %v599, 7
    %v704 = vmul.f32 %v698, %v702
    %706 = vrot.lane.b32.xlu0 %v700, 64
    %v707 = vpop.permute.xlu0 %706
    %v709 = vmul.f32 %v698, %v707
    %711 = vrot.lane.b32.xlu0 %v709, 32
    %v712 = vpop.permute.xlu0 %711
    %v714 = vadd.f32 %v704, %v712
    %v715 = vtanh.pop %v714
    %717 = vrot.lane.b32.xlu0 %v715, 64
    %v718 = vpop.permute.xlu0 %717
    %v720 = vmul.f32 %v698, %v718
    %722 = vrot.lane.b32.xlu0 %v720, 32
    %v723 = vpop.permute.xlu0 %722
    %vm725 = vcmask 258052
    %726 = vst.msk [vmem:[#allocation2] sm:$0x10] %vm725, %v723
    %v727 = vmul.f32 %v720, %v266
    %v729 = vrot.slane %v727, 4
    %730 = vrot.lane.b32.xlu0 %v729, 32
    %v731 = vpop.permute.xlu0 %730
    %v732 = vsel %vm149, %v731, 0
    %734 = vmatprep.subr.mxu0 0.0
    %735 = vmatpush1.msra.mxu0 0.0
    %736 = vmatprep.subr.mxu0 0.0
    %737 = vmatpush1.msra.mxu0 0.0
    %738 = vmatprep.subr.mxu0 0.0
    %739 = vmatpush1.msra.mxu0 0.0
    %740 = vmatprep.subr.mxu0 0.0
    %741 = vmatpush1.msra.mxu0 0.0
    %742 = vmatprep.subr.mxu0 0.0
    %743 = vmatpush1.msra.mxu0 0.0
    %744 = vmatprep.subr.mxu0 0.0
    %745 = vmatpush1.msra.mxu0 0.0
    %746 = vmatprep.subr.mxu0 0.0
    %747 = vmatpush1.msra.mxu0 0.0
    %748 = vmatprep.subr.mxu0 0.0
    %749 = vmatpush1.msra.mxu0 0.0
    %750 = vmatprep.subr.mxu0 0.0
    %751 = vmatpush1.msra.mxu0 0.0
    %752 = vmatprep.subr.mxu0 0.0
    %753 = vmatpush1.msra.mxu0 0.0
    %754 = vmatprep.subr.mxu0 0.0
    %755 = vmatpush1.msra.mxu0 0.0
    %756 = vmatprep.subr.mxu0 0.0
    %757 = vmatpush1.msra.mxu0 0.0
    %758 = vmatprep.subr.mxu0 0.0
    %759 = vmatpush1.msra.mxu0 %v36
    %760 = vmatprep.subr.mxu0 0.0
    %761 = vmatpush1.msra.mxu0 %v35
    %762 = vmatprep.subr.mxu0 0.0
    %763 = vmatpush1.msra.mxu0 %v34
    %764 = vmatprep.subr.mxu0 0.0
    %765 = vmatpush1.msra.mxu0 %v33
    %766 = vmatprep.subr.mxu0 0.0
    %767 = vmatpush2.msra.mxu0 0.0
    %768 = vmatprep.subr.mxu0 0.0
    %769 = vmatpush2.msra.mxu0 0.0
    %770 = vmatprep.subr.mxu0 0.0
    %771 = vmatpush2.msra.mxu0 0.0
    %772 = vmatprep.subr.mxu0 0.0
    %773 = vmatpush2.msra.mxu0 0.0
    %774 = vmatprep.subr.mxu0 0.0
    %775 = vmatpush2.msra.mxu0 0.0
    %776 = vmatprep.subr.mxu0 0.0
    %777 = vmatpush2.msra.mxu0 0.0
    %778 = vmatprep.subr.mxu0 0.0
    %779 = vmatpush2.msra.mxu0 0.0
    %780 = vmatprep.subr.mxu0 0.0
    %781 = vmatpush2.msra.mxu0 0.0
    %782 = vmatprep.subr.mxu0 0.0
    %783 = vmatpush2.msra.mxu0 0.0
    %784 = vmatprep.subr.mxu0 0.0
    %785 = vmatpush2.msra.mxu0 0.0
    %786 = vmatprep.subr.mxu0 0.0
    %787 = vmatpush2.msra.mxu0 0.0
    %788 = vmatprep.subr.mxu0 0.0
    %789 = vmatpush2.msra.mxu0 0.0
    %790 = vmatprep.subr.mxu0 0.0
    %791 = vmatpush2.msra.mxu0 0.0
    %792 = vmatprep.subr.mxu0 0.0
    %793 = vmatpush2.msra.mxu0 0.0
    %794 = vmatprep.subr.mxu0 0.0
    %795 = vmatpush2.msra.mxu0 0.0
    %796 = vmatprep.subr.mxu0 0.0
    %797 = vmatpush2.msra.mxu0 0.0
    %798 = vmatprep.mubr.f32.mxu0 0.0
    %799 = vmatmul.mubr.f32.gmra.mxu0 %v732
    %v800 = vpop.f32.mrf.mxu0
    %v801 = vadd.f32 0.0, %v800
    %v802 = vpop.f32.mrf.mxu0
    %803 = vdwg.mxu0
    %v805 = vrot.slane %v801, 3
    %v807 = vadd.f32 %v118, %v805
    %v808 = vxor.u32 %v807, 2147483648
    %v809 = vmul.f32 %v808, 1.442695
    %v810 = vpow.pop %v809
    %v811 = vadd.f32 %v810, 1.0
    %v812 = vrcp.pop %v811
    %v813 = vmul.f32 1.0, %v812
    %v814 = vmul.f32 %v813, 2.0
    %v815 = vsub.f32 %v814, 1.0
    %v817 = vrot.slane %v714, 7
    %v819 = vmul.f32 %v813, %v817
    %821 = vrot.lane.b32.xlu0 %v815, 64
    %v822 = vpop.permute.xlu0 %821
    %v824 = vmul.f32 %v813, %v822
    %826 = vrot.lane.b32.xlu0 %v824, 32
    %v827 = vpop.permute.xlu0 %826
    %v829 = vadd.f32 %v819, %v827
    %v830 = vtanh.pop %v829
    %832 = vrot.lane.b32.xlu0 %v830, 64
    %v833 = vpop.permute.xlu0 %832
    %v835 = vmul.f32 %v813, %v833
    %837 = vrot.lane.b32.xlu0 %v835, 32
    %v838 = vpop.permute.xlu0 %837
    %vm840 = vcmask 259077
    %841 = vst.msk [vmem:[#allocation2] sm:$0x20] %vm840, %v838
    %v842 = vmul.f32 %v835, %v266
    %v844 = vrot.slane %v842, 5
    %845 = vrot.lane.b32.xlu0 %v844, 32
    %v846 = vpop.permute.xlu0 %845
    %v847 = vsel %vm149, %v846, 0
    %849 = vmatprep.subr.mxu0 0.0
    %850 = vmatpush1.msra.mxu0 0.0
    %851 = vmatprep.subr.mxu0 0.0
    %852 = vmatpush1.msra.mxu0 0.0
    %853 = vmatprep.subr.mxu0 0.0
    %854 = vmatpush1.msra.mxu0 0.0
    %855 = vmatprep.subr.mxu0 0.0
    %856 = vmatpush1.msra.mxu0 0.0
    %857 = vmatprep.subr.mxu0 0.0
    %858 = vmatpush1.msra.mxu0 0.0
    %859 = vmatprep.subr.mxu0 0.0
    %860 = vmatpush1.msra.mxu0 0.0
    %861 = vmatprep.subr.mxu0 0.0
    %862 = vmatpush1.msra.mxu0 0.0
    %863 = vmatprep.subr.mxu0 0.0
    %864 = vmatpush1.msra.mxu0 0.0
    %865 = vmatprep.subr.mxu0 0.0
    %866 = vmatpush1.msra.mxu0 0.0
    %867 = vmatprep.subr.mxu0 0.0
    %868 = vmatpush1.msra.mxu0 0.0
    %869 = vmatprep.subr.mxu0 0.0
    %870 = vmatpush1.msra.mxu0 0.0
    %871 = vmatprep.subr.mxu0 0.0
    %872 = vmatpush1.msra.mxu0 0.0
    %873 = vmatprep.subr.mxu0 0.0
    %874 = vmatpush1.msra.mxu0 %v36
    %875 = vmatprep.subr.mxu0 0.0
    %876 = vmatpush1.msra.mxu0 %v35
    %877 = vmatprep.subr.mxu0 0.0
    %878 = vmatpush1.msra.mxu0 %v34
    %879 = vmatprep.subr.mxu0 0.0
    %880 = vmatpush1.msra.mxu0 %v33
    %881 = vmatprep.subr.mxu0 0.0
    %882 = vmatpush2.msra.mxu0 0.0
    %883 = vmatprep.subr.mxu0 0.0
    %884 = vmatpush2.msra.mxu0 0.0
    %885 = vmatprep.subr.mxu0 0.0
    %886 = vmatpush2.msra.mxu0 0.0
    %887 = vmatprep.subr.mxu0 0.0
    %888 = vmatpush2.msra.mxu0 0.0
    %889 = vmatprep.subr.mxu0 0.0
    %890 = vmatpush2.msra.mxu0 0.0
    %891 = vmatprep.subr.mxu0 0.0
    %892 = vmatpush2.msra.mxu0 0.0
    %893 = vmatprep.subr.mxu0 0.0
    %894 = vmatpush2.msra.mxu0 0.0
    %895 = vmatprep.subr.mxu0 0.0
    %896 = vmatpush2.msra.mxu0 0.0
    %897 = vmatprep.subr.mxu0 0.0
    %898 = vmatpush2.msra.mxu0 0.0
    %899 = vmatprep.subr.mxu0 0.0
    %900 = vmatpush2.msra.mxu0 0.0
    %901 = vmatprep.subr.mxu0 0.0
    %902 = vmatpush2.msra.mxu0 0.0
    %903 = vmatprep.subr.mxu0 0.0
    %904 = vmatpush2.msra.mxu0 0.0
    %905 = vmatprep.subr.mxu0 0.0
    %906 = vmatpush2.msra.mxu0 0.0
    %907 = vmatprep.subr.mxu0 0.0
    %908 = vmatpush2.msra.mxu0 0.0
    %909 = vmatprep.subr.mxu0 0.0
    %910 = vmatpush2.msra.mxu0 0.0
    %911 = vmatprep.subr.mxu0 0.0
    %912 = vmatpush2.msra.mxu0 0.0
    %913 = vmatprep.mubr.f32.mxu0 0.0
    %914 = vmatmul.mubr.f32.gmra.mxu0 %v847
    %v915 = vpop.f32.mrf.mxu0
    %v916 = vadd.f32 0.0, %v915
    %v917 = vpop.f32.mrf.mxu0
    %918 = vdwg.mxu0
    %v920 = vrot.slane %v916, 2
    %v922 = vadd.f32 %v118, %v920
    %v923 = vxor.u32 %v922, 2147483648
    %v924 = vmul.f32 %v923, 1.442695
    %v925 = vpow.pop %v924
    %v926 = vadd.f32 %v925, 1.0
    %v927 = vrcp.pop %v926
    %v928 = vmul.f32 1.0, %v927
    %v929 = vmul.f32 %v928, 2.0
    %v930 = vsub.f32 %v929, 1.0
    %v932 = vrot.slane %v829, 7
    %v934 = vmul.f32 %v928, %v932
    %936 = vrot.lane.b32.xlu0 %v930, 64
    %v937 = vpop.permute.xlu0 %936
    %v939 = vmul.f32 %v928, %v937
    %941 = vrot.lane.b32.xlu0 %v939, 32
    %v942 = vpop.permute.xlu0 %941
    %v944 = vadd.f32 %v934, %v942
    %v945 = vtanh.pop %v944
    %947 = vrot.lane.b32.xlu0 %v945, 64
    %v948 = vpop.permute.xlu0 %947
    %v950 = vmul.f32 %v928, %v948
    %952 = vrot.lane.b32.xlu0 %v950, 32
    %v953 = vpop.permute.xlu0 %952
    %vm955 = vcmask 260102
    %956 = vst.msk [vmem:[#allocation2] sm:$0x40] %vm955, %v953
    %v957 = vmul.f32 %v950, %v266
    %v959 = vrot.slane %v957, 6
    %960 = vrot.lane.b32.xlu0 %v959, 32
    %v961 = vpop.permute.xlu0 %960
    %v962 = vsel %vm149, %v961, 0
    %964 = vmatprep.subr.mxu0 0.0
    %965 = vmatpush1.msra.mxu0 0.0
    %966 = vmatprep.subr.mxu0 0.0
    %967 = vmatpush1.msra.mxu0 0.0
    %968 = vmatprep.subr.mxu0 0.0
    %969 = vmatpush1.msra.mxu0 0.0
    %970 = vmatprep.subr.mxu0 0.0
    %971 = vmatpush1.msra.mxu0 0.0
    %972 = vmatprep.subr.mxu0 0.0
    %973 = vmatpush1.msra.mxu0 0.0
    %974 = vmatprep.subr.mxu0 0.0
    %975 = vmatpush1.msra.mxu0 0.0
    %976 = vmatprep.subr.mxu0 0.0
    %977 = vmatpush1.msra.mxu0 0.0
    %978 = vmatprep.subr.mxu0 0.0
    %979 = vmatpush1.msra.mxu0 0.0
    %980 = vmatprep.subr.mxu0 0.0
    %981 = vmatpush1.msra.mxu0 0.0
    %982 = vmatprep.subr.mxu0 0.0
    %983 = vmatpush1.msra.mxu0 0.0
    %984 = vmatprep.subr.mxu0 0.0
    %985 = vmatpush1.msra.mxu0 0.0
    %986 = vmatprep.subr.mxu0 0.0
    %987 = vmatpush1.msra.mxu0 0.0
    %988 = vmatprep.subr.mxu0 0.0
    %989 = vmatpush1.msra.mxu0 %v36
    %990 = vmatprep.subr.mxu0 0.0
    %991 = vmatpush1.msra.mxu0 %v35
    %992 = vmatprep.subr.mxu0 0.0
    %993 = vmatpush1.msra.mxu0 %v34
    %994 = vmatprep.subr.mxu0 0.0
    %995 = vmatpush1.msra.mxu0 %v33
    %996 = vmatprep.subr.mxu0 0.0
    %997 = vmatpush2.msra.mxu0 0.0
    %998 = vmatprep.subr.mxu0 0.0
    %999 = vmatpush2.msra.mxu0 0.0
    %1000 = vmatprep.subr.mxu0 0.0
    %1001 = vmatpush2.msra.mxu0 0.0
    %1002 = vmatprep.subr.mxu0 0.0
    %1003 = vmatpush2.msra.mxu0 0.0
    %1004 = vmatprep.subr.mxu0 0.0
    %1005 = vmatpush2.msra.mxu0 0.0
    %1006 = vmatprep.subr.mxu0 0.0
    %1007 = vmatpush2.msra.mxu0 0.0
    %1008 = vmatprep.subr.mxu0 0.0
    %1009 = vmatpush2.msra.mxu0 0.0
    %1010 = vmatprep.subr.mxu0 0.0
    %1011 = vmatpush2.msra.mxu0 0.0
    %1012 = vmatprep.subr.mxu0 0.0
    %1013 = vmatpush2.msra.mxu0 0.0
    %1014 = vmatprep.subr.mxu0 0.0
    %1015 = vmatpush2.msra.mxu0 0.0
    %1016 = vmatprep.subr.mxu0 0.0
    %1017 = vmatpush2.msra.mxu0 0.0
    %1018 = vmatprep.subr.mxu0 0.0
    %1019 = vmatpush2.msra.mxu0 0.0
    %1020 = vmatprep.subr.mxu0 0.0
    %1021 = vmatpush2.msra.mxu0 0.0
    %1022 = vmatprep.subr.mxu0 0.0
    %1023 = vmatpush2.msra.mxu0 0.0
    %1024 = vmatprep.subr.mxu0 0.0
    %1025 = vmatpush2.msra.mxu0 0.0
    %1026 = vmatprep.subr.mxu0 0.0
    %1027 = vmatpush2.msra.mxu0 0.0
    %1028 = vmatprep.mubr.f32.mxu0 0.0
    %1029 = vmatmul.mubr.f32.gmra.mxu0 %v962
    %v1030 = vpop.f32.mrf.mxu0
    %v1031 = vadd.f32 0.0, %v1030
    %v1032 = vpop.f32.mrf.mxu0
    %1033 = vdwg.mxu0
    %v1035 = vrot.slane %v1031, 1
    %v1037 = vadd.f32 %v118, %v1035
    %v1038 = vxor.u32 %v1037, 2147483648
    %v1039 = vmul.f32 %v1038, 1.442695
    %v1040 = vpow.pop %v1039
    %v1041 = vadd.f32 %v1040, 1.0
    %v1042 = vrcp.pop %v1041
    %v1043 = vmul.f32 1.0, %v1042
    %v1044 = vmul.f32 %v1043, 2.0
    %v1045 = vsub.f32 %v1044, 1.0
    %v1047 = vrot.slane %v944, 7
    %v1049 = vmul.f32 %v1043, %v1047
    %1051 = vrot.lane.b32.xlu0 %v1045, 64
    %v1052 = vpop.permute.xlu0 %1051
    %v1054 = vmul.f32 %v1043, %v1052
    %1056 = vrot.lane.b32.xlu0 %v1054, 32
    %v1057 = vpop.permute.xlu0 %1056
    %v1059 = vadd.f32 %v1049, %v1057
    %v1060 = vtanh.pop %v1059
    %1062 = vrot.lane.b32.xlu0 %v1060, 64
    %v1063 = vpop.permute.xlu0 %1062
    %v1065 = vmul.f32 %v1043, %v1063
    %1067 = vrot.lane.b32.xlu0 %v1065, 32
    %v1068 = vpop.permute.xlu0 %1067
    %vm1070 = vcmask 261127
    %1071 = vst.msk [vmem:[#allocation2] sm:$0x80] %vm1070, %v1068
    %v1072 = vld [vmem:[#allocation2] sm:$0xff]
    %v1073 = vlaneseq
    %v1074 = vshrl.u32 %v1073, 7
    %v1075 = vsub.s32 7, %v1074
    %v1076 = vrot.slane %v1065, %v1075
    %1078 = vrot.lane.b32.xlu0 %v1076, 32
    %v1079 = vpop.permute.xlu0 %1078
    %v1081 = vmul.f32 %v1072, %v1079
    %v1082 = vsel %vm149, %v1081, 0.0
    %1083 = vadd.xlane.f32.xlu0 %v1082
    %v1084 = vpop.xlane.xlu0 %1083
    %v1085 = vrot.slane %v1084, 4
    %v1086 = vmax.f32 %v1084, %v1085
    %v1087 = vrot.slane %v1086, 2
    %v1088 = vmax.f32 %v1086, %v1087
    %v1089 = vrot.slane %v1088, 1
    %v1090 = vmax.f32 %v1088, %v1089
    %v1091 = vsub.f32 %v1084, %v1090
    %v1092 = vmul.f32 %v1091, 1.442695
    %v1093 = vpow.pop %v1092
    %v1094 = vrot.slane %v1093, 4
    %v1095 = vadd.f32 %v1093, %v1094
    %v1096 = vrot.slane %v1095, 2
    %v1097 = vadd.f32 %v1095, %v1096
    %v1098 = vrot.slane %v1097, 1
    %v1099 = vadd.f32 %v1097, %v1098
    %v1100 = vrcp.pop %v1099
    %v1101 = vmul.f32 %v1093, %v1100
    %v1102 = vmul.f32 %v1101, %v1072
    %v1103 = vsel %vm149, %v1102, 0.0
    %v1104 = vrot.slane %v1103, 4
    %v1105 = vadd.f32 %v1103, %v1104
    %v1106 = vrot.slane %v1105, 2
    %v1107 = vadd.f32 %v1105, %v1106
    %v1108 = vrot.slane %v1107, 1
    %v1109 = vadd.f32 %v1107, %v1108
    %1110 = vst.msk [vmem:[#allocation3] sm:$0x1] %vm261, %v1109
    // Predicated region
    $region38: #{lstm1_forward.1} parent=1 // pred_check
      _
    $region39: #{lstm1_forward.1} parent=1 // pred_check_branch
      %1112 = sbr.rel (0) target = $region41
    $region40: #{lstm1_forward.1} parent=1 // pred_region
      %s1114 = ssub.s32 16, 16
      %1115 = vsyncadd [#allocation4], %s1114
      %s1117 = sshll.u32 [#allocation3], 4
      %s1118 = int_to_ptr.vmem [resolvable:$true] %s1117
      %1120 = dma.vmem_to_hbm [thread:$0]  %s1118, 16, %s9, [#allocation4]
    $region41: #{lstm1_forward.1} parent=1 // pred_fallthru
      _
    // Predicated region
    $region42: #{lstm1_forward.1} parent=1 // pred_check
      _
    $region43: #{lstm1_forward.1} parent=1 // pred_check_branch
      %1122 = sbr.rel (0) target = $region45
    $region44: #{lstm1_forward.1} parent=1 // pred_region
      %1123 = dma.done [#allocation4], 16
    $region45: #{lstm1_forward.1} parent=1 // pred_fallthru
      _
    %1124 = vsyncpa [#allocation4], 1

</llo_original>
